<compile_context>
chip_gen: v6e
topology: v6e:2x2x1
jax: 0.10.0
libtpu: 0.0.40
codegen_flags: <defaults>
</compile_context>

<pallas_src>
import functools

import jax
import jax.numpy as jnp
from jax.experimental import pallas as pl
from jax.experimental.pallas import tpu as pltpu


def _round_up(a, m):
    return -(-a // m) * m


def _ffn_kernel(x_ref, w1_ref, b1_ref, w2_ref, b2_ref, g_ref, beta_ref,
                o_ref, acc_ref, *, eps):
    k = pl.program_id(1)

    # ---- Linear1 chunk on the MXU: (TM, H) @ (H, TK), f32 accumulation.
    lhs = x_ref[...].astype(w1_ref.dtype)
    h = jnp.dot(lhs, w1_ref[...], preferred_element_type=jnp.float32)
    h = h + b1_ref[...].astype(jnp.float32)

    # Exact GELU (erf form == torch.nn.GELU() default); elementwise over the
    # 4H dim, so applying it per K-chunk is exact.
    h = 0.5 * h * (1.0 + jax.lax.erf(h * 0.7071067811865476))

    # ---- Linear2 chunk: (TM, TK) @ (TK, H).  Write on k==0, accumulate after:
    # saves one full (TM, H) f32 scratch read+write per row tile vs init + '+='.
    part = jnp.dot(h.astype(w2_ref.dtype), w2_ref[...],
                   preferred_element_type=jnp.float32)

    @pl.when(k == 0)
    def _first():
        acc_ref[...] = part

    @pl.when(k > 0)
    def _rest():
        acc_ref[...] += part

    # ---- Epilogue (last K step only): bias2 + residual + LayerNorm.
    @pl.when(k == pl.num_programs(1) - 1)
    def _finalize():
        y = acc_ref[...] + b2_ref[...].astype(jnp.float32)
        r = x_ref[...].astype(jnp.float32) + y           # residual add
        # Single-pass LN statistics: one sweep over the (TM, H) f32 tile.
        inv_h = 1.0 / r.shape[-1]
        mean = jnp.sum(r, axis=-1, keepdims=True) * inv_h
        ex2 = jnp.sum(r * r, axis=-1, keepdims=True) * inv_h
        var = jnp.maximum(ex2 - mean * mean, 0.0)        # biased var, like PyTorch
        inv = jax.lax.rsqrt(var + eps)
        out = ((r - mean) * inv * g_ref[...].astype(jnp.float32)
               + beta_ref[...].astype(jnp.float32))
        o_ref[...] = out.astype(o_ref.dtype)


def _vmem_capacity_bytes():
    try:
        return int(pltpu.get_tpu_info().vmem_capacity_bytes)
    except Exception:
        return 64 * 1024 * 1024          # conservative (v7x-sized) fallback


def _choose_tiles(M, H, H4, x_bytes, w_bytes, out_bytes, tm, tk):
    """Generation-aware row/K tiles + VMEM limit (roofline-driven)."""
    vmem_cap = _vmem_capacity_bytes()
    if vmem_cap >= 100 * 1024 * 1024:
        # v5e / v6e (128 MiB VMEM).  TM~1024 puts weight-side arithmetic
        # intensity above v6e's ~650 flops/byte knee; v5e's ~240 knee is
        # cleared long before that.
        tm_target = 1024 if tm is None else tm
        tk_target = 512 if tk is None else tk
        vmem_limit = 100 * 1024 * 1024
    else:
        # v7x: 64 MiB VMEM per TensorCore.  TM=512 already clears its ~300
        # flops/byte knee; shrink TK for very wide models to stay in budget.
        tm_target = 512 if tm is None else tm
        tk_target = (256 if H >= 8192 else 512) if tk is None else tk
        vmem_limit = 56 * 1024 * 1024

    tm_eff = min(tm_target, _round_up(M, 8))
    # Keep >=2 row tiles for large M so the "parallel" grid axis can be sharded
    # across TensorCores (v7x megacore) without tanking weight reuse.
    if M >= 512 and -(-M // tm_eff) == 1:
        tm_eff = _round_up(-(-M // 2), 8)

    # K tile: largest multiple of 128 dividing 4H and <= tk_target; otherwise
    # keep the whole 4H resident (tiny models, e.g. the demo shape).
    tk_eff = H4
    if H4 > tk_target:
        cand = (tk_target // 128) * 128
        while cand >= 128:
            if H4 % cand == 0:
                tk_eff = cand
                break
            cand -= 128

    # Shrink tiles if the double-buffered working set would overflow VMEM.
    def _need(tm_, tk_):
        return (2 * tm_ * H * (x_bytes + out_bytes)    # x + out, double-buffered
                + tm_ * H * 4                           # f32 accumulator scratch
                + 4 * H * tk_ * w_bytes)                # W1 + W2 chunks, double-buffered
    while _need(tm_eff, tk_eff) > int(0.9 * vmem_limit) and tm_eff > 64:
        tm_eff = max(64, _round_up(tm_eff // 2, 8))
    while (_need(tm_eff, tk_eff) > int(0.9 * vmem_limit)
           and tk_eff > 128 and tk_eff % 256 == 0):
        tk_eff //= 2

    return tm_eff, tk_eff, vmem_limit


def feed_forward(x, w1, b1, w2, b2, gamma, beta, *, eps=1e-5, tm=None, tk=None,
                 matmul_dtype=None):
    """GPT FFN block: LayerNorm(x + Linear2(GELU(Linear1(x)))).

    x: (B, T, H).  w1: (H, 4H), b1: (4H,), w2: (4H, H), b2: (H,),
    gamma/beta: (H,).  Returns (B, T, H) in x.dtype.

    matmul_dtype: optional MXU operand dtype (e.g. jnp.bfloat16).  Weights are
    cast wrapper-side (halves weight HBM traffic); x is cast in-kernel right
    before the dot.  None keeps the given parameter dtypes (matches the f32
    PyTorch reference exactly).  bf16 is a deliberate mixed-precision deviation.
    """
    B, T, H = x.shape
    H4 = w1.shape[1]
    M = B * T

    if matmul_dtype is not None:
        w1 = w1.astype(matmul_dtype)
        w2 = w2.astype(matmul_dtype)

    out_dtype = x.dtype
    x2 = x.reshape(M, H)   # no jnp.pad: ragged last row tile handled by cdiv grid

    tm_eff, tk_eff, vmem_limit = _choose_tiles(
        M, H, H4, x2.dtype.itemsize, w1.dtype.itemsize,
        jnp.dtype(out_dtype).itemsize, tm, tk)

    grid = (pl.cdiv(M, tm_eff), H4 // tk_eff)

    # Bias / LN params as (1, C) rows so they broadcast cleanly in-kernel.
    b1r = b1.reshape(1, H4)
    b2r = b2.reshape(1, H)
    gr = gamma.reshape(1, H)
    br = beta.reshape(1, H)

    # Advisory cost estimate: weights are re-streamed once per row tile.
    cost = pl.CostEstimate(
        flops=4 * M * H * H4 + 12 * M * H,
        transcendentals=M * H4,
        bytes_accessed=(
            M * H * (x2.dtype.itemsize + jnp.dtype(out_dtype).itemsize)
            + grid[0] * (int(w1.size) * w1.dtype.itemsize
                         + int(w2.size) * w2.dtype.itemsize)
            + sum(int(a.size) * a.dtype.itemsize
                  for a in (b1, b2, gamma, beta))))

    out2 = pl.pallas_call(
        functools.partial(_ffn_kernel, eps=eps),
        out_shape=jax.ShapeDtypeStruct((M, H), out_dtype),
        grid_spec=pltpu.PrefetchScalarGridSpec(
            num_scalar_prefetch=0,
            grid=grid,
            in_specs=[
                pl.BlockSpec((tm_eff, H), lambda i, k: (i, 0)),   # x rows (resident over k)
                pl.BlockSpec((H, tk_eff), lambda i, k: (0, k)),   # W1 column chunk
                pl.BlockSpec((1, tk_eff), lambda i, k: (0, k)),   # b1 chunk
                pl.BlockSpec((tk_eff, H), lambda i, k: (k, 0)),   # W2 row chunk
                pl.BlockSpec((1, H), lambda i, k: (0, 0)),        # b2
                pl.BlockSpec((1, H), lambda i, k: (0, 0)),        # gamma
                pl.BlockSpec((1, H), lambda i, k: (0, 0)),        # beta
            ],
            out_specs=pl.BlockSpec((tm_eff, H), lambda i, k: (i, 0)),
            scratch_shapes=[pltpu.VMEM((tm_eff, H), jnp.float32)],
        ),
        compiler_params=pltpu.CompilerParams(
            dimension_semantics=("parallel", "arbitrary"),
            vmem_limit_bytes=vmem_limit,
        ),
        cost_estimate=cost,
    )(x2, w1, b1r, w2, b2r, gr, br)

    return out2.reshape(B, T, H)


def _reference(x, w1, b1, w2, b2, gamma, beta, eps=1e-5):
    h = x @ w1 + b1
    h = jax.nn.gelu(h, approximate=False)
    y = h @ w2 + b2
    r = x + y
    mean = jnp.mean(r, axis=-1, keepdims=True)
    var = jnp.mean((r - mean) ** 2, axis=-1, keepdims=True)
    return (r - mean) * jax.lax.rsqrt(var + eps) * gamma + beta


if __name__ == "__main__":
    B, T, H = 2, 8, 32          # arg.hidden_layer_state = 32
    H4 = 4 * H

    key = jax.random.PRNGKey(0)
    kx, k1, k2, k3, k4, k5 = jax.random.split(key, 6)

    x = jax.random.normal(kx, (B, T, H), dtype=jnp.float32)
    # Deterministic synthetic parameters (stored as (in, out) for the kernel).
    w1 = jax.random.normal(k1, (H, H4), dtype=jnp.float32) * (1.0 / jnp.sqrt(H))
    b1 = jax.random.normal(k2, (H4,), dtype=jnp.float32) * 0.01
    w2 = jax.random.normal(k3, (H4, H), dtype=jnp.float32) * (1.0 / jnp.sqrt(H4))
    b2 = jax.random.normal(k4, (H,), dtype=jnp.float32) * 0.01
    gamma = jnp.ones((H,), dtype=jnp.float32) + 0.05 * jax.random.normal(k5, (H,))
    beta = jnp.zeros((H,), dtype=jnp.float32)

    # f32 path: exact match to the PyTorch module semantics.
    out = feed_forward(x, w1, b1, w2, b2, gamma, beta)
    out = jax.block_until_ready(out)
    ref = _reference(x, w1, b1, w2, b2, gamma, beta)
    assert out.shape == (B, T, H)
    assert jnp.allclose(out, ref, atol=1e-4, rtol=1e-4), (
        float(jnp.max(jnp.abs(out - ref))))

    # bf16 MXU path (halved weight HBM traffic) — deliberate mixed-precision
    # deviation from the f32 reference, so only a sanity check here.
    out_bf16 = feed_forward(x, w1, b1, w2, b2, gamma, beta,
                            matmul_dtype=jnp.bfloat16)
    out_bf16 = jax.block_until_ready(out_bf16)
    assert out_bf16.shape == (B, T, H)
    assert bool(jnp.all(jnp.isfinite(out_bf16)))

    print("KERNEL_OK")
</pallas_src>

<mosaic_0001>
module attributes {stable_mosaic.version = 11 : i64} {
  func.func @_ffn_kernel(%arg0: i32, %arg1: i32, %arg2: memref<16x32xf32, #tpu.memory_space<vmem>>, %arg3: memref<32x128xf32, #tpu.memory_space<vmem>>, %arg4: memref<1x128xf32, #tpu.memory_space<vmem>>, %arg5: memref<128x32xf32, #tpu.memory_space<vmem>>, %arg6: memref<1x32xf32, #tpu.memory_space<vmem>>, %arg7: memref<1x32xf32, #tpu.memory_space<vmem>>, %arg8: memref<1x32xf32, #tpu.memory_space<vmem>>, %arg9: memref<16x32xf32, #tpu.memory_space<vmem>>, %arg10: memref<16x32xf32, #tpu.memory_space<vmem>>) attributes {dimension_semantics = [#tpu.dimension_semantics<parallel>, #tpu.dimension_semantics<arbitrary>], iteration_bounds = array<i64: 1, 1>, scalar_prefetch = 0 : i64, scratch_operands = 1 : i64, tpu.core_type = #tpu.core_type<tc>, window_params = [{transform_indices = @transform_0, window_bounds = array<i64: 16, 32>}, {transform_indices = @transform_1, window_bounds = array<i64: 32, 128>}, {transform_indices = @transform_2, window_bounds = array<i64: 1, 128>}, {transform_indices = @transform_3, window_bounds = array<i64: 128, 32>}, {pipeline_mode = #tpu.pipeline_mode<synchronous>, transform_indices = @transform_4, window_bounds = array<i64: 1, 32>}, {pipeline_mode = #tpu.pipeline_mode<synchronous>, transform_indices = @transform_5, window_bounds = array<i64: 1, 32>}, {pipeline_mode = #tpu.pipeline_mode<synchronous>, transform_indices = @transform_6, window_bounds = array<i64: 1, 32>}, {transform_indices = @transform_7, window_bounds = array<i64: 16, 32>}]} {
    %c0 = arith.constant 0 : index
    %c0_0 = arith.constant 0 : index
    %0 = vector.load %arg2[%c0, %c0_0] : memref<16x32xf32, #tpu.memory_space<vmem>>, vector<16x32xf32>
    %c0_1 = arith.constant 0 : index
    %c0_2 = arith.constant 0 : index
    %1 = vector.load %arg3[%c0_1, %c0_2] : memref<32x128xf32, #tpu.memory_space<vmem>>, vector<32x128xf32>
    %cst = arith.constant dense<0.000000e+00> : vector<16x128xf32>
    %2 = tpu.matmul %0, %1, %cst {dimension_numbers = #tpu.dot_dimension_numbers<[1], [0], [0], [1], [0, 0, 1, 1], [], []>} : vector<16x32xf32>, vector<32x128xf32>, vector<16x128xf32> -> vector<16x128xf32>
    %c0_3 = arith.constant 0 : index
    %c0_4 = arith.constant 0 : index
    %3 = vector.load %arg4[%c0_3, %c0_4] : memref<1x128xf32, #tpu.memory_space<vmem>>, vector<1x128xf32>
    %4 = vector.broadcast %3 : vector<1x128xf32> to vector<16x128xf32>
    %5 = arith.addf %2, %4 : vector<16x128xf32>
    %cst_5 = arith.constant 5.000000e-01 : f32
    %6 = vector.broadcast %cst_5 : f32 to vector<16x128xf32>
    %7 = arith.mulf %6, %5 : vector<16x128xf32>
    %cst_6 = arith.constant 0.707106769 : f32
    %8 = vector.broadcast %cst_6 : f32 to vector<16x128xf32>
    %9 = arith.mulf %5, %8 : vector<16x128xf32>
    %10 = math.erf %9 : vector<16x128xf32>
    %cst_7 = arith.constant 1.000000e+00 : f32
    %11 = vector.broadcast %cst_7 : f32 to vector<16x128xf32>
    %12 = arith.addf %11, %10 : vector<16x128xf32>
    %13 = arith.mulf %7, %12 : vector<16x128xf32>
    %c0_8 = arith.constant 0 : index
    %c0_9 = arith.constant 0 : index
    %14 = vector.load %arg5[%c0_8, %c0_9] : memref<128x32xf32, #tpu.memory_space<vmem>>, vector<128x32xf32>
    %cst_10 = arith.constant dense<0.000000e+00> : vector<16x32xf32>
    %15 = tpu.matmul %13, %14, %cst_10 {dimension_numbers = #tpu.dot_dimension_numbers<[1], [0], [0], [1], [0, 0, 1, 1], [], []>} : vector<16x128xf32>, vector<128x32xf32>, vector<16x32xf32> -> vector<16x32xf32>
    %c0_i32 = arith.constant 0 : i32
    %16 = arith.cmpi eq, %arg1, %c0_i32 : i32
    %17 = arith.extui %16 : i1 to i32
    %c0_i32_11 = arith.constant 0 : i32
    %18 = arith.cmpi ne, %17, %c0_i32_11 : i32
    scf.if %18 {
      %c0_16 = arith.constant 0 : index
      %c0_17 = arith.constant 0 : index
      %25 = vector.load %arg10[%c0_16, %c0_17] : memref<16x32xf32, #tpu.memory_space<vmem>>, vector<16x32xf32>
      tpu.vector_store %arg10[%c0_16, %c0_17], %15 {strides = array<i32>} : memref<16x32xf32, #tpu.memory_space<vmem>>, vector<16x32xf32>,
    } else {
    }
    %c0_i32_12 = arith.constant 0 : i32
    %19 = arith.cmpi sgt, %arg1, %c0_i32_12 : i32
    %20 = arith.extui %19 : i1 to i32
    %c0_i32_13 = arith.constant 0 : i32
    %21 = arith.cmpi ne, %20, %c0_i32_13 : i32
    scf.if %21 {
      %c0_16 = arith.constant 0 : index
      %c0_17 = arith.constant 0 : index
      %25 = vector.load %arg10[%c0_16, %c0_17] : memref<16x32xf32, #tpu.memory_space<vmem>>, vector<16x32xf32>
      %26 = arith.addf %25, %15 : vector<16x32xf32>
      %c0_18 = arith.constant 0 : index
      %c0_19 = arith.constant 0 : index
      %27 = vector.load %arg10[%c0_18, %c0_19] : memref<16x32xf32, #tpu.memory_space<vmem>>, vector<16x32xf32>
      tpu.vector_store %arg10[%c0_18, %c0_19], %26 {strides = array<i32>} : memref<16x32xf32, #tpu.memory_space<vmem>>, vector<16x32xf32>,
    } else {
    }
    %c0_i32_14 = arith.constant 0 : i32
    %22 = arith.cmpi eq, %arg1, %c0_i32_14 : i32
    %23 = arith.extui %22 : i1 to i32
    %c0_i32_15 = arith.constant 0 : i32
    %24 = arith.cmpi ne, %23, %c0_i32_15 : i32
    scf.if %24 {
      %c0_16 = arith.constant 0 : index
      %c0_17 = arith.constant 0 : index
      %25 = vector.load %arg10[%c0_16, %c0_17] : memref<16x32xf32, #tpu.memory_space<vmem>>, vector<16x32xf32>
      %c0_18 = arith.constant 0 : index
      %c0_19 = arith.constant 0 : index
      %26 = vector.load %arg6[%c0_18, %c0_19] : memref<1x32xf32, #tpu.memory_space<vmem>>, vector<1x32xf32>
      %27 = vector.broadcast %26 : vector<1x32xf32> to vector<16x32xf32>
      %28 = arith.addf %25, %27 : vector<16x32xf32>
      %c0_20 = arith.constant 0 : index
      %c0_21 = arith.constant 0 : index
      %29 = vector.load %arg2[%c0_20, %c0_21] : memref<16x32xf32, #tpu.memory_space<vmem>>, vector<16x32xf32>
      %30 = arith.addf %29, %28 : vector<16x32xf32>
      %cst_22 = arith.constant dense<0.000000e+00> : vector<16xf32>
      %31 = vector.multi_reduction <add>, %30, %cst_22 [1] : vector<16x32xf32> to vector<16xf32>
      %32 = vector.shape_cast %31 : vector<16xf32> to vector<16x1xf32>
      %cst_23 = arith.constant 3.125000e-02 : f32
      %33 = vector.broadcast %cst_23 : f32 to vector<16x1xf32>
      %34 = arith.mulf %32, %33 : vector<16x1xf32>
      %35 = arith.mulf %30, %30 : vector<16x32xf32>
      %cst_24 = arith.constant dense<0.000000e+00> : vector<16xf32>
      %36 = vector.multi_reduction <add>, %35, %cst_24 [1] : vector<16x32xf32> to vector<16xf32>
      %37 = vector.shape_cast %36 : vector<16xf32> to vector<16x1xf32>
      %cst_25 = arith.constant 3.125000e-02 : f32
      %38 = vector.broadcast %cst_25 : f32 to vector<16x1xf32>
      %39 = arith.mulf %37, %38 : vector<16x1xf32>
      %40 = arith.mulf %34, %34 : vector<16x1xf32>
      %41 = arith.subf %39, %40 : vector<16x1xf32>
      %cst_26 = arith.constant 0.000000e+00 : f32
      %42 = vector.broadcast %cst_26 : f32 to vector<16x1xf32>
      %43 = arith.maximumf %41, %42 : vector<16x1xf32>
      %cst_27 = arith.constant 9.99999974E-6 : f32
      %44 = vector.broadcast %cst_27 : f32 to vector<16x1xf32>
      %45 = arith.addf %43, %44 : vector<16x1xf32>
      %46 = math.rsqrt %45 : vector<16x1xf32>
      %47 = vector.broadcast %34 : vector<16x1xf32> to vector<16x32xf32>
      %48 = arith.subf %30, %47 : vector<16x32xf32>
      %49 = vector.broadcast %46 : vector<16x1xf32> to vector<16x32xf32>
      %50 = arith.mulf %48, %49 : vector<16x32xf32>
      %c0_28 = arith.constant 0 : index
      %c0_29 = arith.constant 0 : index
      %51 = vector.load %arg7[%c0_28, %c0_29] : memref<1x32xf32, #tpu.memory_space<vmem>>, vector<1x32xf32>
      %52 = vector.broadcast %51 : vector<1x32xf32> to vector<16x32xf32>
      %53 = arith.mulf %50, %52 : vector<16x32xf32>
      %c0_30 = arith.constant 0 : index
      %c0_31 = arith.constant 0 : index
      %54 = vector.load %arg8[%c0_30, %c0_31] : memref<1x32xf32, #tpu.memory_space<vmem>>, vector<1x32xf32>
      %55 = vector.broadcast %54 : vector<1x32xf32> to vector<16x32xf32>
      %56 = arith.addf %53, %55 : vector<16x32xf32>
      %c0_32 = arith.constant 0 : index
      %c0_33 = arith.constant 0 : index
      %57 = vector.load %arg9[%c0_32, %c0_33] : memref<16x32xf32, #tpu.memory_space<vmem>>, vector<16x32xf32>
      tpu.vector_store %arg9[%c0_32, %c0_33], %56 {strides = array<i32>} : memref<16x32xf32, #tpu.memory_space<vmem>>, vector<16x32xf32>,
    } else {
    }
    return
  }
  func.func @transform_0(%arg0: i32, %arg1: i32) -> (i32, i32) {
    %c0_i32 = arith.constant 0 : i32
    %c0_i32_0 = arith.constant 0 : i32
    return %arg0, %c0_i32 : i32, i32
  }
  func.func @transform_1(%arg0: i32, %arg1: i32) -> (i32, i32) {
    %c0_i32 = arith.constant 0 : i32
    %c0_i32_0 = arith.constant 0 : i32
    return %c0_i32, %arg1 : i32, i32
  }
  func.func @transform_2(%arg0: i32, %arg1: i32) -> (i32, i32) {
    %c0_i32 = arith.constant 0 : i32
    %c0_i32_0 = arith.constant 0 : i32
    return %c0_i32, %arg1 : i32, i32
  }
  func.func @transform_3(%arg0: i32, %arg1: i32) -> (i32, i32) {
    %c0_i32 = arith.constant 0 : i32
    %c0_i32_0 = arith.constant 0 : i32
    return %arg1, %c0_i32 : i32, i32
  }
  func.func @transform_4(%arg0: i32, %arg1: i32) -> (i32, i32) {
    %c0_i32 = arith.constant 0 : i32
    %c0_i32_0 = arith.constant 0 : i32
    %c0_i32_1 = arith.constant 0 : i32
    return %c0_i32, %c0_i32_0 : i32, i32
  }
  func.func @transform_5(%arg0: i32, %arg1: i32) -> (i32, i32) {
    %c0_i32 = arith.constant 0 : i32
    %c0_i32_0 = arith.constant 0 : i32
    %c0_i32_1 = arith.constant 0 : i32
    return %c0_i32, %c0_i32_0 : i32, i32
  }
  func.func @transform_6(%arg0: i32, %arg1: i32) -> (i32, i32) {
    %c0_i32 = arith.constant 0 : i32
    %c0_i32_0 = arith.constant 0 : i32
    %c0_i32_1 = arith.constant 0 : i32
    return %c0_i32, %c0_i32_0 : i32, i32
  }
  func.func @transform_7(%arg0: i32, %arg1: i32) -> (i32, i32) {
    %c0_i32 = arith.constant 0 : i32
    %c0_i32_0 = arith.constant 0 : i32
    return %arg0, %c0_i32 : i32, i32
  }
}

</mosaic_0001>

<llo_original>
// kernel: tpu_custom_call.1
$region0: #{tpu_custom_call.1}
  #allocation0 [shape = 'u32[]', space=smem, size = 0x4, offset = 0x4, fixed_abs, tag = 'smem constant byte address 0x4 - core index']
  #allocation1 [shape = 'u32[144,128]{1,0:T(1,128)}', space=vmem, size = 0x12000, scoped, tag = 'internal scratch']
  #allocation2 [shape = 'f32[16,32]{1,0:T(8,128)}', space=vmem, size = 0x2000, scoped, tag = 'scratch operand']
  %s0 = inlined_call_operand.vmem [shape: f32[16,32], index: 0, kind: input, shape index: {}]
  %s1 = inlined_call_operand.vmem [shape: f32[32,128], index: 1, kind: input, shape index: {}]
  %s2 = inlined_call_operand.vmem [shape: f32[1,128], index: 2, kind: input, shape index: {}]
  %s3 = inlined_call_operand.vmem [shape: f32[128,32], index: 3, kind: input, shape index: {}]
  %s4 = inlined_call_operand.vmem [shape: f32[1,32], index: 4, kind: input, shape index: {}]
  %s5 = inlined_call_operand.vmem [shape: f32[1,32], index: 5, kind: input, shape index: {}]
  %s6 = inlined_call_operand.vmem [shape: f32[1,32], index: 6, kind: input, shape index: {}]
  %s7 = inlined_call_operand.hbm [shape: f32[16,32], index: 7, kind: output, shape index: {}]
  %s8 = sld [smem:[#allocation0]]
  $region50: #{tpu_custom_call.1} parent=0
    _
  %s10 = ssub.s32 1, %s8
  %s11 = scalar_select 0, %s10, %s8
  $region1: #{tpu_custom_call.1} parent=0
    #allocation3 [shape = 'u8[8192]{0}', space=vmem, size = 0x2000, scoped, tag = 'output window, operand 0, single buffered']
    #allocation4 [shape = 's32[1]{0}', space=sflag, size = 0x4, scoped, tag = 'scoped memory for tpu_custom_call.1']
    %12 = vsyncpa [#allocation4], 0
    // Predicated region
    $region2: #{tpu_custom_call.1} parent=1 // pred_check
      _
    $region3: #{tpu_custom_call.1} parent=1 // pred_check_branch
      %14 = sbr.rel (0) target = $region5
    $region4: #{tpu_custom_call.1} parent=1 // pred_region
      _
    $region5: #{tpu_custom_call.1} parent=1 // pred_fallthru
      _
    // Predicated region
    $region6: #{tpu_custom_call.1} parent=1 // pred_check
      _
    $region7: #{tpu_custom_call.1} parent=1 // pred_check_branch
      %16 = sbr.rel (0) target = $region9
    $region8: #{tpu_custom_call.1} parent=1 // pred_region
      _
    $region9: #{tpu_custom_call.1} parent=1 // pred_fallthru
      _
    // Predicated region
    $region10: #{tpu_custom_call.1} parent=1 // pred_check
      _
    $region11: #{tpu_custom_call.1} parent=1 // pred_check_branch
      %18 = sbr.rel (0) target = $region13
    $region12: #{tpu_custom_call.1} parent=1 // pred_region
      _
    $region13: #{tpu_custom_call.1} parent=1 // pred_fallthru
      _
    // Predicated region
    $region14: #{tpu_custom_call.1} parent=1 // pred_check
      _
    $region15: #{tpu_custom_call.1} parent=1 // pred_check_branch
      %20 = sbr.rel (0) target = $region17
    $region16: #{tpu_custom_call.1} parent=1 // pred_region
      _
    $region17: #{tpu_custom_call.1} parent=1 // pred_fallthru
      _
    // Predicated region
    $region18: #{tpu_custom_call.1} parent=1 // pred_check
      _
    $region19: #{tpu_custom_call.1} parent=1 // pred_check_branch
      %22 = sbr.rel (0) target = $region21
    $region20: #{tpu_custom_call.1} parent=1 // pred_region
      _
    $region21: #{tpu_custom_call.1} parent=1 // pred_fallthru
      _
    // Predicated region
    $region22: #{tpu_custom_call.1} parent=1 // pred_check
      _
    $region23: #{tpu_custom_call.1} parent=1 // pred_check_branch
      %24 = sbr.rel (0) target = $region25
    $region24: #{tpu_custom_call.1} parent=1 // pred_region
      _
    $region25: #{tpu_custom_call.1} parent=1 // pred_fallthru
      _
    // Predicated region
    $region26: #{tpu_custom_call.1} parent=1 // pred_check
      _
    $region27: #{tpu_custom_call.1} parent=1 // pred_check_branch
      %26 = sbr.rel (0) target = $region29
    $region28: #{tpu_custom_call.1} parent=1 // pred_region
      _
    $region29: #{tpu_custom_call.1} parent=1 // pred_fallthru
      _
    %v27 = vld [vmem:[%s0] sm:$0xff]
    %v28 = vld [vmem:[%s0 + $0x8] sm:$0xff]
    %v29 = vld [vmem:[%s1] sm:$0xff]
    %v30 = vld [vmem:[%s1 + $0x8] sm:$0xff]
    %v31 = vld [vmem:[%s1 + $0x10] sm:$0xff]
    %v32 = vld [vmem:[%s1 + $0x18] sm:$0xff]
    %v33 = vld [vmem:[%s2] sm:$0x1]
    %v35 = vlaneseq
    %v36 = vshrl.u32 %v35, 7
    %v37 = vsub.s32 0, %v36
    %v38 = vrot.slane %v33, %v37
    %vm40 = vcmask 261120
    %v42 = vsel %vm40, %v27, 0
    %v45 = vsel %vm40, %v28, 0
    %47 = vmatprep.subr.mxu0 0.0
    %48 = vmatpush1.msra.mxu0 0.0
    %49 = vmatprep.subr.mxu0 0.0
    %50 = vmatpush1.msra.mxu0 0.0
    %51 = vmatprep.subr.mxu0 0.0
    %52 = vmatpush1.msra.mxu0 0.0
    %53 = vmatprep.subr.mxu0 0.0
    %54 = vmatpush1.msra.mxu0 0.0
    %55 = vmatprep.subr.mxu0 0.0
    %56 = vmatpush1.msra.mxu0 0.0
    %57 = vmatprep.subr.mxu0 0.0
    %58 = vmatpush1.msra.mxu0 0.0
    %59 = vmatprep.subr.mxu0 0.0
    %60 = vmatpush1.msra.mxu0 0.0
    %61 = vmatprep.subr.mxu0 0.0
    %62 = vmatpush1.msra.mxu0 0.0
    %63 = vmatprep.subr.mxu0 0.0
    %64 = vmatpush1.msra.mxu0 0.0
    %65 = vmatprep.subr.mxu0 0.0
    %66 = vmatpush1.msra.mxu0 0.0
    %67 = vmatprep.subr.mxu0 0.0
    %68 = vmatpush1.msra.mxu0 0.0
    %69 = vmatprep.subr.mxu0 0.0
    %70 = vmatpush1.msra.mxu0 0.0
    %71 = vmatprep.subr.mxu0 0.0
    %72 = vmatpush1.msra.mxu0 %v32
    %73 = vmatprep.subr.mxu0 0.0
    %74 = vmatpush1.msra.mxu0 %v31
    %75 = vmatprep.subr.mxu0 0.0
    %76 = vmatpush1.msra.mxu0 %v30
    %77 = vmatprep.subr.mxu0 0.0
    %78 = vmatpush1.msra.mxu0 %v29
    %79 = vmatprep.subr.mxu0 0.0
    %80 = vmatpush2.msra.mxu0 0.0
    %81 = vmatprep.subr.mxu0 0.0
    %82 = vmatpush2.msra.mxu0 0.0
    %83 = vmatprep.subr.mxu0 0.0
    %84 = vmatpush2.msra.mxu0 0.0
    %85 = vmatprep.subr.mxu0 0.0
    %86 = vmatpush2.msra.mxu0 0.0
    %87 = vmatprep.subr.mxu0 0.0
    %88 = vmatpush2.msra.mxu0 0.0
    %89 = vmatprep.subr.mxu0 0.0
    %90 = vmatpush2.msra.mxu0 0.0
    %91 = vmatprep.subr.mxu0 0.0
    %92 = vmatpush2.msra.mxu0 0.0
    %93 = vmatprep.subr.mxu0 0.0
    %94 = vmatpush2.msra.mxu0 0.0
    %95 = vmatprep.subr.mxu0 0.0
    %96 = vmatpush2.msra.mxu0 0.0
    %97 = vmatprep.subr.mxu0 0.0
    %98 = vmatpush2.msra.mxu0 0.0
    %99 = vmatprep.subr.mxu0 0.0
    %100 = vmatpush2.msra.mxu0 0.0
    %101 = vmatprep.subr.mxu0 0.0
    %102 = vmatpush2.msra.mxu0 0.0
    %103 = vmatprep.subr.mxu0 0.0
    %104 = vmatpush2.msra.mxu0 0.0
    %105 = vmatprep.subr.mxu0 0.0
    %106 = vmatpush2.msra.mxu0 0.0
    %107 = vmatprep.subr.mxu0 0.0
    %108 = vmatpush2.msra.mxu0 0.0
    %109 = vmatprep.subr.mxu0 0.0
    %110 = vmatpush2.msra.mxu0 0.0
    %111 = vmatprep.mubr.f32.mxu0 0.0
    %112 = vmatmul.mubr.f32.gmra.mxu0 %v42
    %v113 = vpop.f32.mrf.mxu0
    %v114 = vadd.f32 %v38, %v113
    %v115 = vpop.f32.mrf.mxu0
    %116 = vmatprep.mubr.f32.mxu0 0.0
    %117 = vmatmul.mubr.f32.gmra.mxu0 %v45
    %v118 = vpop.f32.mrf.mxu0
    %v119 = vadd.f32 %v38, %v118
    %v120 = vpop.f32.mrf.mxu0
    %121 = vdwg.mxu0
    %v122 = vmul.f32 %v114, 0.5
    %v123 = vmul.f32 %v119, 0.5
    %v124 = vmul.f32 %v114, 0.70710677
    %v125 = vmul.f32 %v119, 0.70710677
    %v126 = verf.f32.pop %v124
    %v127 = verf.f32.pop %v125
    %v128 = vadd.f32 %v126, 1.0
    %v129 = vadd.f32 %v127, 1.0
    %v130 = vmul.f32 %v122, %v128
    %v131 = vmul.f32 %v123, %v129
    %v132 = vld [vmem:[%s3] sm:$0xff]
    %v133 = vld [vmem:[%s3 + $0x8] sm:$0xff]
    %v134 = vld [vmem:[%s3 + $0x10] sm:$0xff]
    %v135 = vld [vmem:[%s3 + $0x18] sm:$0xff]
    %v136 = vld [vmem:[%s3 + $0x20] sm:$0xff]
    %v137 = vld [vmem:[%s3 + $0x28] sm:$0xff]
    %v138 = vld [vmem:[%s3 + $0x30] sm:$0xff]
    %v139 = vld [vmem:[%s3 + $0x38] sm:$0xff]
    %v140 = vld [vmem:[%s3 + $0x40] sm:$0xff]
    %v141 = vld [vmem:[%s3 + $0x48] sm:$0xff]
    %v142 = vld [vmem:[%s3 + $0x50] sm:$0xff]
    %v143 = vld [vmem:[%s3 + $0x58] sm:$0xff]
    %v144 = vld [vmem:[%s3 + $0x60] sm:$0xff]
    %v145 = vld [vmem:[%s3 + $0x68] sm:$0xff]
    %v146 = vld [vmem:[%s3 + $0x70] sm:$0xff]
    %v147 = vld [vmem:[%s3 + $0x78] sm:$0xff]
    %148 = vmatprep.subr.mxu0 0.0
    %149 = vmatpush1.msra.mxu0 %v147
    %150 = vmatprep.subr.mxu0 0.0
    %151 = vmatpush1.msra.mxu0 %v146
    %152 = vmatprep.subr.mxu0 0.0
    %153 = vmatpush1.msra.mxu0 %v145
    %154 = vmatprep.subr.mxu0 0.0
    %155 = vmatpush1.msra.mxu0 %v144
    %156 = vmatprep.subr.mxu0 0.0
    %157 = vmatpush1.msra.mxu0 %v143
    %158 = vmatprep.subr.mxu0 0.0
    %159 = vmatpush1.msra.mxu0 %v142
    %160 = vmatprep.subr.mxu0 0.0
    %161 = vmatpush1.msra.mxu0 %v141
    %162 = vmatprep.subr.mxu0 0.0
    %163 = vmatpush1.msra.mxu0 %v140
    %164 = vmatprep.subr.mxu0 0.0
    %165 = vmatpush1.msra.mxu0 %v139
    %166 = vmatprep.subr.mxu0 0.0
    %167 = vmatpush1.msra.mxu0 %v138
    %168 = vmatprep.subr.mxu0 0.0
    %169 = vmatpush1.msra.mxu0 %v137
    %170 = vmatprep.subr.mxu0 0.0
    %171 = vmatpush1.msra.mxu0 %v136
    %172 = vmatprep.subr.mxu0 0.0
    %173 = vmatpush1.msra.mxu0 %v135
    %174 = vmatprep.subr.mxu0 0.0
    %175 = vmatpush1.msra.mxu0 %v134
    %176 = vmatprep.subr.mxu0 0.0
    %177 = vmatpush1.msra.mxu0 %v133
    %178 = vmatprep.subr.mxu0 0.0
    %179 = vmatpush1.msra.mxu0 %v132
    %180 = vmatprep.subr.mxu0 0.0
    %181 = vmatpush2.msra.mxu0 0.0
    %182 = vmatprep.subr.mxu0 0.0
    %183 = vmatpush2.msra.mxu0 0.0
    %184 = vmatprep.subr.mxu0 0.0
    %185 = vmatpush2.msra.mxu0 0.0
    %186 = vmatprep.subr.mxu0 0.0
    %187 = vmatpush2.msra.mxu0 0.0
    %188 = vmatprep.subr.mxu0 0.0
    %189 = vmatpush2.msra.mxu0 0.0
    %190 = vmatprep.subr.mxu0 0.0
    %191 = vmatpush2.msra.mxu0 0.0
    %192 = vmatprep.subr.mxu0 0.0
    %193 = vmatpush2.msra.mxu0 0.0
    %194 = vmatprep.subr.mxu0 0.0
    %195 = vmatpush2.msra.mxu0 0.0
    %196 = vmatprep.subr.mxu0 0.0
    %197 = vmatpush2.msra.mxu0 0.0
    %198 = vmatprep.subr.mxu0 0.0
    %199 = vmatpush2.msra.mxu0 0.0
    %200 = vmatprep.subr.mxu0 0.0
    %201 = vmatpush2.msra.mxu0 0.0
    %202 = vmatprep.subr.mxu0 0.0
    %203 = vmatpush2.msra.mxu0 0.0
    %204 = vmatprep.subr.mxu0 0.0
    %205 = vmatpush2.msra.mxu0 0.0
    %206 = vmatprep.subr.mxu0 0.0
    %207 = vmatpush2.msra.mxu0 0.0
    %208 = vmatprep.subr.mxu0 0.0
    %209 = vmatpush2.msra.mxu0 0.0
    %210 = vmatprep.subr.mxu0 0.0
    %211 = vmatpush2.msra.mxu0 0.0
    %212 = vmatprep.mubr.f32.mxu0 0.0
    %213 = vmatmul.mubr.f32.gmra.mxu0 %v130
    %v214 = vpop.f32.mrf.mxu0
    %v215 = vadd.f32 0.0, %v214
    %v216 = vpop.f32.mrf.mxu0
    %217 = vmatprep.mubr.f32.mxu0 0.0
    %218 = vmatmul.mubr.f32.gmra.mxu0 %v131
    %v219 = vpop.f32.mrf.mxu0
    %v220 = vadd.f32 0.0, %v219
    %v221 = vpop.f32.mrf.mxu0
    %222 = vdwg.mxu0
    %p223 = scmp.eq.s32.totalorder 0, 0
    // Predicated region
    $region30: #{tpu_custom_call.1} parent=1 // pred_check
      %p224 = pneg %p223
    $region31: #{tpu_custom_call.1} parent=1 // pred_check_branch
      %226 = sbr.rel (%p224) target = $region33
    $region32: #{tpu_custom_call.1} parent=1 // pred_region
      %227 = vst.msk [vmem:[#allocation2] sm:$0xff] %vm40, %v215
      %228 = vst.msk [vmem:[#allocation2 + $0x8] sm:$0xff] %vm40, %v220
    $region33: #{tpu_custom_call.1} parent=1 // pred_fallthru
      _
    %p229 = scmp.gt.s32.totalorder 0, 0
    // Predicated region
    $region34: #{tpu_custom_call.1} parent=1 // pred_check
      %p230 = pneg %p229
    $region35: #{tpu_custom_call.1} parent=1 // pred_check_branch
      %232 = sbr.rel (%p230) target = $region37
    $region36: #{tpu_custom_call.1} parent=1 // pred_region
      %v233 = vld [vmem:[#allocation2] sm:$0xff]
      %v234 = vld [vmem:[#allocation2 + $0x8] sm:$0xff]
      %v235 = vadd.f32 %v233, %v215
      %v236 = vadd.f32 %v234, %v220
      %237 = vst.msk [vmem:[#allocation2] sm:$0xff] %vm40, %v235
      %238 = vst.msk [vmem:[#allocation2 + $0x8] sm:$0xff] %vm40, %v236
    $region37: #{tpu_custom_call.1} parent=1 // pred_fallthru
      _
    // Predicated region
    $region38: #{tpu_custom_call.1} parent=1 // pred_check
      %p239 = pneg %p223
    $region39: #{tpu_custom_call.1} parent=1 // pred_check_branch
      %241 = sbr.rel (%p239) target = $region41
    $region40: #{tpu_custom_call.1} parent=1 // pred_region
      %v242 = vld [vmem:[#allocation2] sm:$0xff]
      %v243 = vld [vmem:[#allocation2 + $0x8] sm:$0xff]
      %v244 = vld [vmem:[%s4] sm:$0x1]
      %v246 = vlaneseq
      %v247 = vshrl.u32 %v246, 7
      %v248 = vsub.s32 0, %v247
      %v249 = vrot.slane %v244, %v248
      %v251 = vadd.f32 %v242, %v249
      %v252 = vadd.f32 %v243, %v249
      %v253 = vld [vmem:[%s0] sm:$0xff]
      %v254 = vld [vmem:[%s0 + $0x8] sm:$0xff]
      %v255 = vadd.f32 %v253, %v251
      %v256 = vadd.f32 %v254, %v252
      %v257 = vsel %vm40, %v255, 0.0
      %258 = vadd.xlane.f32.xlu0 %v257
      %v259 = vpop.xlane.xlu0 %258
      %v260 = vsel %vm40, %v256, 0.0
      %261 = vadd.xlane.f32.xlu0 %v260
      %v262 = vpop.xlane.xlu0 %261
      %v263 = vmul.f32 %v259, 0.03125
      %v264 = vmul.f32 %v262, 0.03125
      %v265 = vmul.f32 %v255, %v255
      %v266 = vmul.f32 %v256, %v256
      %v267 = vsel %vm40, %v265, 0.0
      %268 = vadd.xlane.f32.xlu0 %v267
      %v269 = vpop.xlane.xlu0 %268
      %v270 = vsel %vm40, %v266, 0.0
      %271 = vadd.xlane.f32.xlu0 %v270
      %v272 = vpop.xlane.xlu0 %271
      %v273 = vmul.f32 %v269, 0.03125
      %v274 = vmul.f32 %v272, 0.03125
      %v275 = vmul.f32 %v263, %v263
      %v276 = vmul.f32 %v264, %v264
      %v277 = vsub.f32 %v273, %v275
      %v278 = vsub.f32 %v274, %v276
      %v279 = vmax.f32 %v277, 0.0
      %v280 = vmax.f32 %v278, 0.0
      %v281 = vadd.f32 %v279, 1e-05
      %v282 = vadd.f32 %v280, 1e-05
      %v283 = vrsqrt.pop %v281
      %v284 = vrsqrt.pop %v282
      %v285 = vsub.f32 %v255, %v263
      %v286 = vsub.f32 %v256, %v264
      %v287 = vmul.f32 %v285, %v283
      %v288 = vmul.f32 %v286, %v284
      %v289 = vld [vmem:[%s5] sm:$0x1]
      %v291 = vlaneseq
      %v292 = vshrl.u32 %v291, 7
      %v293 = vsub.s32 0, %v292
      %v294 = vrot.slane %v289, %v293
      %v296 = vmul.f32 %v287, %v294
      %v297 = vmul.f32 %v288, %v294
      %v298 = vld [vmem:[%s6] sm:$0x1]
      %v300 = vlaneseq
      %v301 = vshrl.u32 %v300, 7
      %v302 = vsub.s32 0, %v301
      %v303 = vrot.slane %v298, %v302
      %v305 = vadd.f32 %v296, %v303
      %v306 = vadd.f32 %v297, %v303
      %307 = vst.msk [vmem:[#allocation3] sm:$0xff] %vm40, %v305
      %308 = vst.msk [vmem:[#allocation3 + $0x8] sm:$0xff] %vm40, %v306
    $region41: #{tpu_custom_call.1} parent=1 // pred_fallthru
      _
    // Predicated region
    $region42: #{tpu_custom_call.1} parent=1 // pred_check
      _
    $region43: #{tpu_custom_call.1} parent=1 // pred_check_branch
      %310 = sbr.rel (0) target = $region45
    $region44: #{tpu_custom_call.1} parent=1 // pred_region
      %s312 = ssub.s32 256, 256
      %313 = vsyncadd [#allocation4], %s312
      %s314 = sshll.u32 [#allocation3], 4
      %s315 = int_to_ptr.vmem [resolvable:$true] %s314
      %320 = dma.vmem_to_hbm [thread:$0]  %s315, 256, %s7, [#allocation4], 128, 128, 8
    $region45: #{tpu_custom_call.1} parent=1 // pred_fallthru
      _
    // Predicated region
    $region46: #{tpu_custom_call.1} parent=1 // pred_check
      _
    $region47: #{tpu_custom_call.1} parent=1 // pred_check_branch
      %322 = sbr.rel (0) target = $region49
    $region48: #{tpu_custom_call.1} parent=1 // pred_region
      %323 = dma.done [#allocation4], 256
    $region49: #{tpu_custom_call.1} parent=1 // pred_fallthru
      _
    %324 = vsyncpa [#allocation4], 1

</llo_original>
